<compile_context>
chip_gen: v6e
topology: v6e:2x2x1
jax: 0.10.0
libtpu: 0.0.40
codegen_flags: <defaults>
</compile_context>

<pallas_src>
import jax
import jax.numpy as jnp
from jax.experimental import pallas as pl
from jax.experimental.pallas import tpu as pltpu


def _combiner_kernel(x_ref, p_ref, b2_ref, o_ref):
    # x:  [n_models, TB]            (batch on lanes)
    # p:  [hidden, n_models + 2] = [ w1 | b1 | w2 ]   (resident in VMEM)
    # b2: [1]  (SMEM scalar)
    # o:  [1, TB]                   (lane-dense output)
    x = x_ref[...]
    p = p_ref[...]
    n_models = x.shape[0]

    w1 = p[:, :n_models]                     # [H, n_models]
    b1 = p[:, n_models:n_models + 1]         # [H, 1]
    w2 = p[:, n_models + 1:n_models + 2]     # [H, 1]

    # ---- Layer 1 (VPU): unrolled outer-product MAD, [H,1]*[1,TB] -> [H,TB] ----
    h = b1 + w1[:, 0:1] * x[0:1, :]
    for k in range(1, n_models):
        h = h + w1[:, k:k + 1] * x[k:k + 1, :]
    h = jnp.maximum(h, 0.0)                                   # ReLU

    # ---- Layer 2: VPU mul + XLU sublane reduce + SMEM scalar bias ----
    z = jnp.sum(h * w2, axis=0, keepdims=True) + b2_ref[0]    # [1, TB]

    # ---- Sigmoid on the EUP (exact): sigmoid(z) = 0.5*tanh(z/2) + 0.5 ----
    o_ref[...] = (0.5 * jnp.tanh(0.5 * z) + 0.5).astype(o_ref.dtype)


def hybrid_combiner_cols(scores_t, w1, b1, w2, b2, *, max_tile=65536):
    """Core path. scores_t: [n_models, B] f32 (batch on the fast/lane axis).
    Params in PyTorch layout: w1 [H, n_models], b1 [H], w2 [1, H], b2 [1].
    Returns [B, 1] f32."""
    n_models, B = scores_t.shape
    hidden = w1.shape[0]

    # Lane (batch) tile: multiple of 128, capped so (a) VMEM stays well inside
    # the explicit budget below and (b) the grid has >= 2 steps when B > 128
    # (lets the "parallel" axis use both TensorCores on v7x).
    tb = min(max_tile, pl.cdiv(pl.cdiv(B, 2), 128) * 128)
    grid = (pl.cdiv(B, tb),)

    scores_t = scores_t.astype(jnp.float32)
    params = jnp.concatenate(
        [w1.astype(jnp.float32).reshape(hidden, n_models),
         b1.astype(jnp.float32).reshape(hidden, 1),
         w2.astype(jnp.float32).reshape(hidden, 1)],
        axis=1)                                               # [H, n_models+2]
    b2_k = b2.reshape(1).astype(jnp.float32)                  # [1] -> SMEM

    flops_per_row = 2 * n_models * hidden + 3 * hidden + 3
    cost = pl.CostEstimate(
        flops=flops_per_row * B,
        transcendentals=B,
        bytes_accessed=4 * (B * (n_models + 1) + hidden * (n_models + 2) + 1),
    )

    out = pl.pallas_call(
        _combiner_kernel,
        out_shape=jax.ShapeDtypeStruct((1, B), jnp.float32),
        grid=grid,
        in_specs=[
            pl.BlockSpec((n_models, tb), lambda i: (0, i)),          # scores (batch-tiled)
            pl.BlockSpec((hidden, n_models + 2), lambda i: (0, 0)),  # packed weights (resident)
            pl.BlockSpec(memory_space=pltpu.MemorySpace.SMEM),       # b2 scalar
        ],
        out_specs=pl.BlockSpec((1, tb), lambda i: (0, i)),           # lane-dense output
        compiler_params=pltpu.CompilerParams(
            dimension_semantics=("parallel",),
            vmem_limit_bytes=48 * 1024 * 1024,
        ),
        cost_estimate=cost,
    )(scores_t, params, b2_k)

    return out.reshape(B, 1)


def hybrid_combiner(model_scores, w1, b1, w2, b2, *, max_tile=65536):
    """Module-faithful API: model_scores [B, n_models] -> [B, 1].
    The single .T here is the only extra HBM pass; callers that can lay scores
    out as [n_models, B] should call hybrid_combiner_cols directly and skip it."""
    scores_t = jnp.asarray(model_scores, jnp.float32).T
    return hybrid_combiner_cols(scores_t, w1, b1, w2, b2, max_tile=max_tile)


def _xavier_uniform(key, shape, fan_in, fan_out, dtype=jnp.float32):
    # Matches torch.nn.init.xavier_uniform_ semantics (gain=1).
    limit = (6.0 / (fan_in + fan_out)) ** 0.5
    return jax.random.uniform(key, shape, dtype=dtype, minval=-limit, maxval=limit)


def init_params(key, n_models=3, hidden_dim=16):
    # PyTorch Linear layout: weight [out, in], bias [out]; biases zero-init.
    k1, k2 = jax.random.split(key)
    w1 = _xavier_uniform(k1, (hidden_dim, n_models), n_models, hidden_dim)
    b1 = jnp.zeros((hidden_dim,), jnp.float32)
    w2 = _xavier_uniform(k2, (1, hidden_dim), hidden_dim, 1)
    b2 = jnp.zeros((1,), jnp.float32)
    return w1, b1, w2, b2


if __name__ == "__main__":
    key = jax.random.PRNGKey(0)
    k_params, k_x1, k_x2 = jax.random.split(key, 3)

    n_models, hidden_dim = 3, 16
    w1, b1, w2, b2 = init_params(k_params, n_models, hidden_dim)

    def reference(x):
        h = jnp.maximum(
            jnp.dot(x, w1.T, precision=jax.lax.Precision.HIGHEST) + b1, 0.0)
        z = jnp.dot(h, w2.T, precision=jax.lax.Precision.HIGHEST) + b2
        return jax.nn.sigmoid(z)

    # Small case from the module spec (single grid step, ragged 8-of-128 block).
    xs = jax.random.uniform(k_x1, (8, n_models), dtype=jnp.float32)
    out_s = jax.block_until_ready(hybrid_combiner(xs, w1, b1, w2, b2))
    assert out_s.shape == (8, 1)
    assert jnp.allclose(out_s, reference(xs), atol=1e-5, rtol=1e-5)

    # Larger case: >= 2 grid steps + ragged last block (no host-side padding),
    # also exercised through the relayout-free column-major entry point.
    xl = jax.random.uniform(k_x2, (2500, n_models), dtype=jnp.float32)
    out_l = jax.block_until_ready(hybrid_combiner(xl, w1, b1, w2, b2))
    out_lt = jax.block_until_ready(hybrid_combiner_cols(xl.T, w1, b1, w2, b2))
    assert out_l.shape == (2500, 1)
    assert jnp.allclose(out_l, reference(xl), atol=1e-5, rtol=1e-5)
    assert jnp.allclose(out_lt, out_l)

    print("KERNEL_OK")
</pallas_src>

<mosaic_0001>
module attributes {stable_mosaic.version = 11 : i64} {
  func.func @_combiner_kernel(%arg0: i32, %arg1: memref<3x128xf32, #tpu.memory_space<vmem>>, %arg2: memref<16x5xf32, #tpu.memory_space<vmem>>, %arg3: memref<1xf32, #tpu.memory_space<smem>>, %arg4: memref<1x128xf32, #tpu.memory_space<vmem>>) attributes {dimension_semantics = [#tpu.dimension_semantics<parallel>], iteration_bounds = array<i64: 1>, scalar_prefetch = 0 : i64, scratch_operands = 0 : i64, tpu.core_type = #tpu.core_type<tc>, window_params = [{transform_indices = @transform_0, window_bounds = array<i64: 3, 128>}, {pipeline_mode = #tpu.pipeline_mode<synchronous>, transform_indices = @transform_1, window_bounds = array<i64: 16, 5>}, {transform_indices = @transform_2, window_bounds = array<i64: 1>}, {transform_indices = @transform_3, window_bounds = array<i64: 1, 128>}]} {
    %c0 = arith.constant 0 : index
    %c0_0 = arith.constant 0 : index
    %0 = vector.load %arg1[%c0, %c0_0] : memref<3x128xf32, #tpu.memory_space<vmem>>, vector<3x128xf32>
    %c0_1 = arith.constant 0 : index
    %c0_2 = arith.constant 0 : index
    %1 = vector.load %arg2[%c0_1, %c0_2] : memref<16x5xf32, #tpu.memory_space<vmem>>, vector<16x5xf32>
    %2 = vector.extract_strided_slice %1 {offsets = [0, 0], sizes = [16, 3], strides = [1, 1]} : vector<16x5xf32> to vector<16x3xf32>
    %3 = vector.extract_strided_slice %1 {offsets = [0, 3], sizes = [16, 1], strides = [1, 1]} : vector<16x5xf32> to vector<16x1xf32>
    %4 = vector.extract_strided_slice %1 {offsets = [0, 4], sizes = [16, 1], strides = [1, 1]} : vector<16x5xf32> to vector<16x1xf32>
    %5 = vector.extract_strided_slice %2 {offsets = [0, 0], sizes = [16, 1], strides = [1, 1]} : vector<16x3xf32> to vector<16x1xf32>
    %6 = vector.extract_strided_slice %0 {offsets = [0, 0], sizes = [1, 128], strides = [1, 1]} : vector<3x128xf32> to vector<1x128xf32>
    %7 = vector.broadcast %5 : vector<16x1xf32> to vector<16x128xf32>
    %8 = vector.broadcast %6 : vector<1x128xf32> to vector<16x128xf32>
    %9 = arith.mulf %7, %8 : vector<16x128xf32>
    %10 = vector.broadcast %3 : vector<16x1xf32> to vector<16x128xf32>
    %11 = arith.addf %10, %9 : vector<16x128xf32>
    %12 = vector.extract_strided_slice %2 {offsets = [0, 1], sizes = [16, 1], strides = [1, 1]} : vector<16x3xf32> to vector<16x1xf32>
    %13 = vector.extract_strided_slice %0 {offsets = [1, 0], sizes = [1, 128], strides = [1, 1]} : vector<3x128xf32> to vector<1x128xf32>
    %14 = vector.broadcast %12 : vector<16x1xf32> to vector<16x128xf32>
    %15 = vector.broadcast %13 : vector<1x128xf32> to vector<16x128xf32>
    %16 = arith.mulf %14, %15 : vector<16x128xf32>
    %17 = arith.addf %11, %16 : vector<16x128xf32>
    %18 = vector.extract_strided_slice %2 {offsets = [0, 2], sizes = [16, 1], strides = [1, 1]} : vector<16x3xf32> to vector<16x1xf32>
    %19 = vector.extract_strided_slice %0 {offsets = [2, 0], sizes = [1, 128], strides = [1, 1]} : vector<3x128xf32> to vector<1x128xf32>
    %20 = vector.broadcast %18 : vector<16x1xf32> to vector<16x128xf32>
    %21 = vector.broadcast %19 : vector<1x128xf32> to vector<16x128xf32>
    %22 = arith.mulf %20, %21 : vector<16x128xf32>
    %23 = arith.addf %17, %22 : vector<16x128xf32>
    %cst = arith.constant 0.000000e+00 : f32
    %24 = vector.broadcast %cst : f32 to vector<16x128xf32>
    %25 = arith.maximumf %23, %24 : vector<16x128xf32>
    %26 = vector.broadcast %4 : vector<16x1xf32> to vector<16x128xf32>
    %27 = arith.mulf %25, %26 : vector<16x128xf32>
    %cst_3 = arith.constant dense<0.000000e+00> : vector<128xf32>
    %28 = vector.multi_reduction <add>, %27, %cst_3 [0] : vector<16x128xf32> to vector<128xf32>
    %29 = vector.shape_cast %28 : vector<128xf32> to vector<1x128xf32>
    %c0_4 = arith.constant 0 : index
    %30 = memref.load %arg3[%c0_4] : memref<1xf32, #tpu.memory_space<smem>>
    %31 = vector.broadcast %30 : f32 to vector<1x128xf32>
    %32 = arith.addf %29, %31 : vector<1x128xf32>
    %cst_5 = arith.constant 5.000000e-01 : f32
    %33 = vector.broadcast %cst_5 : f32 to vector<1x128xf32>
    %34 = arith.mulf %33, %32 : vector<1x128xf32>
    %35 = math.tanh %34 : vector<1x128xf32>
    %cst_6 = arith.constant 5.000000e-01 : f32
    %36 = vector.broadcast %cst_6 : f32 to vector<1x128xf32>
    %37 = arith.mulf %36, %35 : vector<1x128xf32>
    %cst_7 = arith.constant 5.000000e-01 : f32
    %38 = vector.broadcast %cst_7 : f32 to vector<1x128xf32>
    %39 = arith.addf %37, %38 : vector<1x128xf32>
    %c0_8 = arith.constant 0 : index
    %c0_9 = arith.constant 0 : index
    %40 = vector.load %arg4[%c0_8, %c0_9] : memref<1x128xf32, #tpu.memory_space<vmem>>, vector<1x128xf32>
    tpu.vector_store %arg4[%c0_8, %c0_9], %39 {strides = array<i32>} : memref<1x128xf32, #tpu.memory_space<vmem>>, vector<1x128xf32>,
    return
  }
  func.func @transform_0(%arg0: i32) -> (i32, i32) {
    %c0_i32 = arith.constant 0 : i32
    %c0_i32_0 = arith.constant 0 : i32
    return %c0_i32, %arg0 : i32, i32
  }
  func.func @transform_1(%arg0: i32) -> (i32, i32) {
    %c0_i32 = arith.constant 0 : i32
    %c0_i32_0 = arith.constant 0 : i32
    %c0_i32_1 = arith.constant 0 : i32
    return %c0_i32, %c0_i32_0 : i32, i32
  }
  func.func @transform_2(%arg0: i32) -> i32 {
    %c0_i32 = arith.constant 0 : i32
    %c0_i32_0 = arith.constant 0 : i32
    return %c0_i32 : i32
  }
  func.func @transform_3(%arg0: i32) -> (i32, i32) {
    %c0_i32 = arith.constant 0 : i32
    %c0_i32_0 = arith.constant 0 : i32
    return %c0_i32, %arg0 : i32, i32
  }
}

</mosaic_0001>

<llo_original>
// kernel: tpu_custom_call.1
$region0: #{tpu_custom_call.1}
  #allocation0 [shape = 'u32[]', space=smem, size = 0x4, offset = 0x4, fixed_abs, tag = 'smem constant byte address 0x4 - core index']
  #allocation1 [shape = 'u32[144,128]{1,0:T(1,128)}', space=vmem, size = 0x12000, scoped, tag = 'internal scratch']
  #allocation2 [shape = 'f32[1]{0:T(128)S(6)}', space=smem, size = 0x200, scoped, tag = 'scoped memory for tpu_custom_call.1']
  %s0 = inlined_call_operand.vmem [shape: f32[3,8], index: 0, kind: input, shape index: {}]
  %s1 = inlined_call_operand.vmem [shape: f32[16,5], index: 1, kind: input, shape index: {}]
  %s2 = inlined_call_operand.<no memory space> [shape: f32[1], index: 2, kind: input, shape index: {}]
  %s3 = inlined_call_operand.hbm [shape: f32[1,8], index: 3, kind: output, shape index: {}]
  %s4 = sld [smem:[#allocation0]]
  $region22: #{tpu_custom_call.1} parent=0
    _
  %s6 = ssub.s32 1, %s4
  %s7 = scalar_select 0, %s6, %s4
  %8 = sst [smem:[#allocation2]] %s2
  $region1: #{tpu_custom_call.1} parent=0
    #allocation3 [shape = 'u8[512]{0}', space=vmem, size = 0x400, scoped, tag = 'output window, operand 0, single buffered']
    #allocation4 [shape = 's32[1]{0}', space=sflag, size = 0x4, scoped, tag = 'scoped memory for tpu_custom_call.1']
    %9 = vsyncpa [#allocation4], 0
    // Predicated region
    $region2: #{tpu_custom_call.1} parent=1 // pred_check
      _
    $region3: #{tpu_custom_call.1} parent=1 // pred_check_branch
      %11 = sbr.rel (0) target = $region5
    $region4: #{tpu_custom_call.1} parent=1 // pred_region
      _
    $region5: #{tpu_custom_call.1} parent=1 // pred_fallthru
      _
    // Predicated region
    $region6: #{tpu_custom_call.1} parent=1 // pred_check
      _
    $region7: #{tpu_custom_call.1} parent=1 // pred_check_branch
      %13 = sbr.rel (0) target = $region9
    $region8: #{tpu_custom_call.1} parent=1 // pred_region
      _
    $region9: #{tpu_custom_call.1} parent=1 // pred_fallthru
      _
    // Predicated region
    $region10: #{tpu_custom_call.1} parent=1 // pred_check
      _
    $region11: #{tpu_custom_call.1} parent=1 // pred_check_branch
      %15 = sbr.rel (0) target = $region13
    $region12: #{tpu_custom_call.1} parent=1 // pred_region
      _
    $region13: #{tpu_custom_call.1} parent=1 // pred_fallthru
      _
    %v16 = vld [vmem:[%s0] sm:$0x7]
    %v17 = vld [vmem:[%s1] sm:$0xff]
    %v18 = vld [vmem:[%s1 + $0x8] sm:$0xff]
    %20 = vset.pattern.permute.xlu0 0
    %21 = vperm.xlu0 %20, %v17
    %v22 = vpop.permute.xlu0 %21
    %25 = vset.pattern.permute.xlu0 0
    %26 = vperm.xlu0 %25, %v18
    %v27 = vpop.permute.xlu0 %26
    %v29 = vlaneseq
    %v30 = vshrl.u32 %v29, 7
    %v31 = vsub.s32 0, %v30
    %v32 = vrot.slane %v16, %v31
    %v33 = vmul.f32 %v22, %v32
    %v34 = vmul.f32 %v27, %v32
    %35 = vset.pattern.permute.xlu0 3
    %36 = vperm.xlu0 %35, %v17
    %v37 = vpop.permute.xlu0 %36
    %39 = vset.pattern.permute.xlu0 3
    %40 = vperm.xlu0 %39, %v18
    %v41 = vpop.permute.xlu0 %40
    %v43 = vadd.f32 %v37, %v33
    %v44 = vadd.f32 %v41, %v34
    %45 = vset.pattern.permute.xlu0 1
    %46 = vperm.xlu0 %45, %v17
    %v47 = vpop.permute.xlu0 %46
    %49 = vset.pattern.permute.xlu0 1
    %50 = vperm.xlu0 %49, %v18
    %v51 = vpop.permute.xlu0 %50
    %v53 = vlaneseq
    %v54 = vshrl.u32 %v53, 7
    %v55 = vsub.s32 1, %v54
    %v56 = vrot.slane %v16, %v55
    %v57 = vmul.f32 %v47, %v56
    %v58 = vmul.f32 %v51, %v56
    %v59 = vadd.f32 %v43, %v57
    %v60 = vadd.f32 %v44, %v58
    %61 = vset.pattern.permute.xlu0 2
    %62 = vperm.xlu0 %61, %v17
    %v63 = vpop.permute.xlu0 %62
    %65 = vset.pattern.permute.xlu0 2
    %66 = vperm.xlu0 %65, %v18
    %v67 = vpop.permute.xlu0 %66
    %v69 = vlaneseq
    %v70 = vshrl.u32 %v69, 7
    %v71 = vsub.s32 2, %v70
    %v72 = vrot.slane %v16, %v71
    %v73 = vmul.f32 %v63, %v72
    %v74 = vmul.f32 %v67, %v72
    %v75 = vadd.f32 %v59, %v73
    %v76 = vadd.f32 %v60, %v74
    %v77 = vmax.f32 %v75, 0.0
    %v78 = vmax.f32 %v76, 0.0
    %79 = vset.pattern.permute.xlu0 4
    %80 = vperm.xlu0 %79, %v17
    %v81 = vpop.permute.xlu0 %80
    %83 = vset.pattern.permute.xlu0 4
    %84 = vperm.xlu0 %83, %v18
    %v85 = vpop.permute.xlu0 %84
    %v87 = vmul.f32 %v77, %v81
    %v88 = vmul.f32 %v78, %v85
    %v89 = vadd.f32 %v87, %v88
    %v90 = vrot.slane %v89, 4
    %v91 = vadd.f32 %v89, %v90
    %v92 = vrot.slane %v91, 2
    %v93 = vadd.f32 %v91, %v92
    %v94 = vrot.slane %v93, 1
    %v95 = vadd.f32 %v93, %v94
    %s96 = sld [smem:[#allocation2]]
    %v97 = vstv %s96
    %v98 = vadd.f32 %v95, %v97
    %v99 = vmul.f32 %v98, 0.5
    %v100 = vtanh.pop %v99
    %v101 = vmul.f32 %v100, 0.5
    %v102 = vadd.f32 %v101, 0.5
    %103 = vst [vmem:[#allocation3] sm:$0x1] %v102
    // Predicated region
    $region14: #{tpu_custom_call.1} parent=1 // pred_check
      _
    $region15: #{tpu_custom_call.1} parent=1 // pred_check_branch
      %105 = sbr.rel (0) target = $region17
    $region16: #{tpu_custom_call.1} parent=1 // pred_region
      %s107 = ssub.s32 16, 16
      %108 = vsyncadd [#allocation4], %s107
      %s110 = sshll.u32 [#allocation3], 4
      %s111 = int_to_ptr.vmem [resolvable:$true] %s110
      %113 = dma.vmem_to_hbm [thread:$0]  %s111, 16, %s3, [#allocation4]
    $region17: #{tpu_custom_call.1} parent=1 // pred_fallthru
      _
    // Predicated region
    $region18: #{tpu_custom_call.1} parent=1 // pred_check
      _
    $region19: #{tpu_custom_call.1} parent=1 // pred_check_branch
      %115 = sbr.rel (0) target = $region21
    $region20: #{tpu_custom_call.1} parent=1 // pred_region
      %116 = dma.done [#allocation4], 16
    $region21: #{tpu_custom_call.1} parent=1 // pred_fallthru
      _
    %117 = vsyncpa [#allocation4], 1

</llo_original>
